<compile_context>
chip_gen: v7x
topology: tpu7x:2x2x1
jax: 0.10.0
libtpu: 0.0.40
codegen_flags: <defaults>
</compile_context>

<pallas_src>
import functools
import math

import jax
import jax.numpy as jnp
from jax.experimental import pallas as pl
from jax.experimental.pallas import tpu as pltpu


# --------------------------- fused ConvBlock kernel ---------------------------

def conv_block_kernel(x_ref, w_ref, ch_ref, fc1w_ref, fc2w_ref, o_ref,
                      *, L, K, Cr, a_conv, a_se):
    pad = K // 2
    x = x_ref[0]                                       # [L, Cin] (channels-last)
    Cin = x.shape[1]

    # In-kernel 'same' padding + im2col: xim[i, k*Cin + c] == x[i + k - pad, c]
    zpad = jnp.zeros((pad, Cin), x.dtype)
    xp = jnp.concatenate([zpad, x, zpad], axis=0)      # [L + 2*pad, Cin]
    xim = jnp.concatenate([xp[k:k + L, :] for k in range(K)], axis=1)  # [L, K*Cin]

    # Packed per-channel vectors: 0=conv bias, 1=bn scale, 2=bn shift,
    # 3=fc2 bias, 4[:Cr]=fc1 bias.
    ch = ch_ref[...]
    conv_b = ch[0:1, :]
    bn_s = ch[1:2, :]
    bn_b = ch[2:3, :]
    fc2_b = ch[3:4, :]
    fc1_b = ch[4:5, :Cr]

    # Conv1d as ONE MXU contraction, then folded BatchNorm (inference) + PReLU.
    y = jnp.dot(xim, w_ref[...], preferred_element_type=jnp.float32)
    y = (y + conv_b) * bn_s + bn_b
    y = jnp.where(y > 0, y, a_conv * y)                # PReLU (shared alpha)

    # SE block: global avg pool over length -> fc1 -> PReLU -> fc2 -> sigmoid.
    m = jnp.mean(y, axis=0, keepdims=True)             # [1, Cout]
    h = jnp.dot(m, fc1w_ref[...], preferred_element_type=jnp.float32) + fc1_b
    h = jnp.where(h > 0, h, a_se * h)
    g = jax.nn.sigmoid(
        jnp.dot(h, fc2w_ref[...], preferred_element_type=jnp.float32) + fc2_b)

    # Gate and store in torch's NCW layout ([Cout, L]).
    o_ref[0] = (y * g).T.astype(o_ref.dtype)


def conv_block(x, p):
    """x: [B, L, Cin] -> [B, Cout, L]   (== torch ConvBlock(x) with residual=None)."""
    B, L, Cin = x.shape
    KC, Cout = p["w_im2col"].shape
    K = KC // Cin
    Cr = p["fc1_w"].shape[1]
    kern = functools.partial(conv_block_kernel, L=L, K=K, Cr=Cr,
                             a_conv=p["prelu_conv"], a_se=p["prelu_se"])
    return pl.pallas_call(
        kern,
        out_shape=jax.ShapeDtypeStruct((B, Cout, L), jnp.float32),
        grid=(B,),
        in_specs=[
            pl.BlockSpec((1, L, Cin), lambda b: (b, 0, 0)),
            pl.BlockSpec((KC, Cout), lambda b: (0, 0)),
            pl.BlockSpec((5, Cout), lambda b: (0, 0)),
            pl.BlockSpec((Cout, Cr), lambda b: (0, 0)),
            pl.BlockSpec((Cr, Cout), lambda b: (0, 0)),
        ],
        out_specs=pl.BlockSpec((1, Cout, L), lambda b: (b, 0, 0)),
        compiler_params=pltpu.CompilerParams(dimension_semantics=("parallel",)),
    )(x, p["w_im2col"], p["chvec"], p["fc1_w"], p["fc2_w"])


# --------------------------- parameters ---------------------------

def init_params(key, cin, cout, kernel, reduction):
    """Torch-like parameters; BN running stats folded to scale/shift.

    Non-zero biases / BN stats are used so the numeric check exercises every
    folded term (the torch init zeros some of them, which would hide bugs).
    """
    cr = cout // reduction
    ks = jax.random.split(key, 10)

    def xavier(k, shape, fan_in, fan_out):
        a = math.sqrt(6.0 / (fan_in + fan_out))
        return jax.random.uniform(k, shape, jnp.float32, -a, a)

    eps = 1e-5
    w = xavier(ks[0], (kernel, cin, cout), cin * kernel, cout * kernel)
    conv_b = 0.02 * jax.random.normal(ks[1], (cout,), jnp.float32)
    gamma = 1.0 + 0.1 * jax.random.normal(ks[2], (cout,), jnp.float32)
    beta = 0.05 * jax.random.normal(ks[3], (cout,), jnp.float32)
    r_mean = 0.05 * jax.random.normal(ks[4], (cout,), jnp.float32)
    r_var = 1.0 + 0.1 * jax.random.uniform(ks[5], (cout,), jnp.float32)
    fc1_w = xavier(ks[6], (cout, cr), cout, cr)
    fc1_b = 0.02 * jax.random.normal(ks[7], (cr,), jnp.float32)
    fc2_w = xavier(ks[8], (cr, cout), cr, cout)
    fc2_b = 0.02 * jax.random.normal(ks[9], (cout,), jnp.float32)

    bn_s = gamma / jnp.sqrt(r_var + eps)       # BatchNorm1d (inference) fold
    bn_b = beta - r_mean * bn_s

    return {"w": w, "b": conv_b, "bn_s": bn_s, "bn_b": bn_b,
            "fc1_w": fc1_w, "fc1_b": fc1_b, "fc2_w": fc2_w, "fc2_b": fc2_b,
            "prelu_conv": 0.25, "prelu_se": 0.25}     # nn.PReLU() default init


def pack_params(p):
    """Pack params into the kernel layout (im2col weight + one [5, Cout] slab)."""
    K, Cin, Cout = p["w"].shape
    Cr = p["fc1_w"].shape[1]
    chvec = jnp.zeros((5, Cout), jnp.float32)
    chvec = chvec.at[0].set(p["b"])
    chvec = chvec.at[1].set(p["bn_s"])
    chvec = chvec.at[2].set(p["bn_b"])
    chvec = chvec.at[3].set(p["fc2_b"])
    chvec = chvec.at[4, :Cr].set(p["fc1_b"])
    return {"w_im2col": p["w"].reshape(K * Cin, Cout).astype(jnp.float32),
            "chvec": chvec,
            "fc1_w": p["fc1_w"].astype(jnp.float32),
            "fc2_w": p["fc2_w"].astype(jnp.float32),
            "prelu_conv": float(p["prelu_conv"]),
            "prelu_se": float(p["prelu_se"])}


# --------------------------- pure-JAX reference (for checking) ---------------------------

def conv_block_ref(x, p):
    B, L, Cin = x.shape
    K, _, Cout = p["w"].shape
    pad = K // 2
    xp = jnp.pad(x, ((0, 0), (pad, pad), (0, 0)))
    y = jnp.zeros((B, L, Cout), jnp.float32) + p["b"]
    for k in range(K):
        y = y + jnp.einsum("blc,co->blo", xp[:, k:k + L, :], p["w"][k])
    y = y * p["bn_s"] + p["bn_b"]
    y = jnp.where(y > 0, y, p["prelu_conv"] * y)
    m = y.mean(axis=1)                                  # [B, Cout]
    h = m @ p["fc1_w"] + p["fc1_b"]
    h = jnp.where(h > 0, h, p["prelu_se"] * h)
    g = jax.nn.sigmoid(h @ p["fc2_w"] + p["fc2_b"])
    y = y * g[:, None, :]
    return jnp.transpose(y, (0, 2, 1))                  # NCW, like torch


# --------------------------- main ---------------------------

if __name__ == "__main__":
    B, L, Cin = 2, 16, 4
    Cout, K, reduction = 32, 7, 4

    key = jax.random.PRNGKey(0)
    kx, kp = jax.random.split(key)
    x = jax.random.normal(kx, (B, L, Cin), jnp.float32)

    raw = init_params(kp, Cin, Cout, K, reduction)
    packed = pack_params(raw)

    out = conv_block(x, packed)
    jax.block_until_ready(out)

    ref = conv_block_ref(x, raw)
    assert out.shape == (B, Cout, L)
    assert bool(jnp.allclose(out, ref, rtol=1e-4, atol=1e-4))

    print("KERNEL_OK")
</pallas_src>

<mosaic_0001>
module attributes {stable_mosaic.version = 11 : i64} {
  func.func @conv_block_kernel(%arg0: i32, %arg1: memref<1x16x4xf32, #tpu.memory_space<vmem>>, %arg2: memref<28x32xf32, #tpu.memory_space<vmem>>, %arg3: memref<5x32xf32, #tpu.memory_space<vmem>>, %arg4: memref<32x8xf32, #tpu.memory_space<vmem>>, %arg5: memref<8x32xf32, #tpu.memory_space<vmem>>, %arg6: memref<1x32x16xf32, #tpu.memory_space<vmem>>) attributes {dimension_semantics = [#tpu.dimension_semantics<parallel>], iteration_bounds = array<i64: 2>, scalar_prefetch = 0 : i64, scratch_operands = 0 : i64, tpu.core_type = #tpu.core_type<tc>, window_params = [{transform_indices = @transform_0, window_bounds = array<i64: 1, 16, 4>}, {pipeline_mode = #tpu.pipeline_mode<synchronous>, transform_indices = @transform_1, window_bounds = array<i64: 28, 32>}, {pipeline_mode = #tpu.pipeline_mode<synchronous>, transform_indices = @transform_2, window_bounds = array<i64: 5, 32>}, {pipeline_mode = #tpu.pipeline_mode<synchronous>, transform_indices = @transform_3, window_bounds = array<i64: 32, 8>}, {pipeline_mode = #tpu.pipeline_mode<synchronous>, transform_indices = @transform_4, window_bounds = array<i64: 8, 32>}, {transform_indices = @transform_5, window_bounds = array<i64: 1, 32, 16>}]} {
    %c0 = arith.constant 0 : index
    %c0_0 = arith.constant 0 : index
    %c0_1 = arith.constant 0 : index
    %0 = vector.load %arg1[%c0, %c0_0, %c0_1] : memref<1x16x4xf32, #tpu.memory_space<vmem>>, vector<1x16x4xf32>
    %1 = vector.shape_cast %0 : vector<1x16x4xf32> to vector<16x4xf32>
    %cst = arith.constant 0.000000e+00 : f32
    %2 = vector.broadcast %cst : f32 to vector<3x4xf32>
    %3 = tpu.concatenate %2, %1, %2 in 0 : vector<3x4xf32>, vector<16x4xf32>, vector<3x4xf32> -> vector<22x4xf32>
    %4 = vector.extract_strided_slice %3 {offsets = [0, 0], sizes = [16, 4], strides = [1, 1]} : vector<22x4xf32> to vector<16x4xf32>
    %5 = vector.extract_strided_slice %3 {offsets = [1, 0], sizes = [16, 4], strides = [1, 1]} : vector<22x4xf32> to vector<16x4xf32>
    %6 = vector.extract_strided_slice %3 {offsets = [2, 0], sizes = [16, 4], strides = [1, 1]} : vector<22x4xf32> to vector<16x4xf32>
    %7 = vector.extract_strided_slice %3 {offsets = [3, 0], sizes = [16, 4], strides = [1, 1]} : vector<22x4xf32> to vector<16x4xf32>
    %8 = vector.extract_strided_slice %3 {offsets = [4, 0], sizes = [16, 4], strides = [1, 1]} : vector<22x4xf32> to vector<16x4xf32>
    %9 = vector.extract_strided_slice %3 {offsets = [5, 0], sizes = [16, 4], strides = [1, 1]} : vector<22x4xf32> to vector<16x4xf32>
    %10 = vector.extract_strided_slice %3 {offsets = [6, 0], sizes = [16, 4], strides = [1, 1]} : vector<22x4xf32> to vector<16x4xf32>
    %11 = tpu.concatenate %4, %5, %6, %7, %8, %9, %10 in 1 : vector<16x4xf32>, vector<16x4xf32>, vector<16x4xf32>, vector<16x4xf32>, vector<16x4xf32>, vector<16x4xf32>, vector<16x4xf32> -> vector<16x28xf32>
    %c0_2 = arith.constant 0 : index
    %c0_3 = arith.constant 0 : index
    %12 = vector.load %arg3[%c0_2, %c0_3] : memref<5x32xf32, #tpu.memory_space<vmem>>, vector<5x32xf32>
    %13 = vector.extract_strided_slice %12 {offsets = [0, 0], sizes = [1, 32], strides = [1, 1]} : vector<5x32xf32> to vector<1x32xf32>
    %14 = vector.extract_strided_slice %12 {offsets = [1, 0], sizes = [1, 32], strides = [1, 1]} : vector<5x32xf32> to vector<1x32xf32>
    %15 = vector.extract_strided_slice %12 {offsets = [2, 0], sizes = [1, 32], strides = [1, 1]} : vector<5x32xf32> to vector<1x32xf32>
    %16 = vector.extract_strided_slice %12 {offsets = [3, 0], sizes = [1, 32], strides = [1, 1]} : vector<5x32xf32> to vector<1x32xf32>
    %17 = vector.extract_strided_slice %12 {offsets = [4, 0], sizes = [1, 8], strides = [1, 1]} : vector<5x32xf32> to vector<1x8xf32>
    %c0_4 = arith.constant 0 : index
    %c0_5 = arith.constant 0 : index
    %18 = vector.load %arg2[%c0_4, %c0_5] : memref<28x32xf32, #tpu.memory_space<vmem>>, vector<28x32xf32>
    %cst_6 = arith.constant dense<0.000000e+00> : vector<16x32xf32>
    %19 = tpu.matmul %11, %18, %cst_6 {dimension_numbers = #tpu.dot_dimension_numbers<[1], [0], [0], [1], [0, 0, 1, 1], [], []>} : vector<16x28xf32>, vector<28x32xf32>, vector<16x32xf32> -> vector<16x32xf32>
    %20 = vector.broadcast %13 : vector<1x32xf32> to vector<16x32xf32>
    %21 = arith.addf %19, %20 : vector<16x32xf32>
    %22 = vector.broadcast %14 : vector<1x32xf32> to vector<16x32xf32>
    %23 = arith.mulf %21, %22 : vector<16x32xf32>
    %24 = vector.broadcast %15 : vector<1x32xf32> to vector<16x32xf32>
    %25 = arith.addf %23, %24 : vector<16x32xf32>
    %cst_7 = arith.constant 0.000000e+00 : f32
    %26 = vector.broadcast %cst_7 : f32 to vector<16x32xf32>
    %27 = arith.cmpf ogt, %25, %26 : vector<16x32xf32>
    %cst_8 = arith.constant 2.500000e-01 : f32
    %28 = vector.broadcast %cst_8 : f32 to vector<16x32xf32>
    %29 = arith.mulf %28, %25 : vector<16x32xf32>
    %30 = arith.select %27, %25, %29 : vector<16x32xi1>, vector<16x32xf32>
    %cst_9 = arith.constant dense<0.000000e+00> : vector<32xf32>
    %31 = vector.multi_reduction <add>, %30, %cst_9 [0] : vector<16x32xf32> to vector<32xf32>
    %32 = vector.shape_cast %31 : vector<32xf32> to vector<1x32xf32>
    %cst_10 = arith.constant 1.600000e+01 : f32
    %33 = vector.broadcast %cst_10 : f32 to vector<1x32xf32>
    %34 = arith.divf %32, %33 : vector<1x32xf32>
    %c0_11 = arith.constant 0 : index
    %c0_12 = arith.constant 0 : index
    %35 = vector.load %arg4[%c0_11, %c0_12] : memref<32x8xf32, #tpu.memory_space<vmem>>, vector<32x8xf32>
    %cst_13 = arith.constant dense<0.000000e+00> : vector<1x8xf32>
    %36 = tpu.matmul %34, %35, %cst_13 {dimension_numbers = #tpu.dot_dimension_numbers<[1], [0], [0], [1], [0, 0, 1, 1], [], []>} : vector<1x32xf32>, vector<32x8xf32>, vector<1x8xf32> -> vector<1x8xf32>
    %37 = arith.addf %36, %17 : vector<1x8xf32>
    %cst_14 = arith.constant 0.000000e+00 : f32
    %38 = vector.broadcast %cst_14 : f32 to vector<1x8xf32>
    %39 = arith.cmpf ogt, %37, %38 : vector<1x8xf32>
    %cst_15 = arith.constant 2.500000e-01 : f32
    %40 = vector.broadcast %cst_15 : f32 to vector<1x8xf32>
    %41 = arith.mulf %40, %37 : vector<1x8xf32>
    %42 = arith.select %39, %37, %41 : vector<1x8xi1>, vector<1x8xf32>
    %c0_16 = arith.constant 0 : index
    %c0_17 = arith.constant 0 : index
    %43 = vector.load %arg5[%c0_16, %c0_17] : memref<8x32xf32, #tpu.memory_space<vmem>>, vector<8x32xf32>
    %cst_18 = arith.constant dense<0.000000e+00> : vector<1x32xf32>
    %44 = tpu.matmul %42, %43, %cst_18 {dimension_numbers = #tpu.dot_dimension_numbers<[1], [0], [0], [1], [0, 0, 1, 1], [], []>} : vector<1x8xf32>, vector<8x32xf32>, vector<1x32xf32> -> vector<1x32xf32>
    %45 = arith.addf %44, %16 : vector<1x32xf32>
    %46 = arith.negf %45 : vector<1x32xf32>
    %47 = math.exp %46 : vector<1x32xf32>
    %cst_19 = arith.constant 1.000000e+00 : f32
    %48 = vector.broadcast %cst_19 : f32 to vector<1x32xf32>
    %49 = arith.addf %48, %47 : vector<1x32xf32>
    %50 = arith.divf %48, %49 : vector<1x32xf32>
    %51 = vector.broadcast %50 : vector<1x32xf32> to vector<16x32xf32>
    %52 = arith.mulf %30, %51 : vector<16x32xf32>
    %53 = tpu.transpose %52, [1, 0] : vector<16x32xf32> -> vector<32x16xf32>
    %c0_20 = arith.constant 0 : index
    %c0_21 = arith.constant 0 : index
    %c0_22 = arith.constant 0 : index
    %54 = vector.load %arg6[%c0_20, %c0_21, %c0_22] : memref<1x32x16xf32, #tpu.memory_space<vmem>>, vector<1x32x16xf32>
    %55 = vector.shape_cast %54 : vector<1x32x16xf32> to vector<32x16xf32>
    %56 = vector.shape_cast %53 : vector<32x16xf32> to vector<1x32x16xf32>
    tpu.vector_store %arg6[%c0_20, %c0_21, %c0_22], %56 {strides = array<i32>} : memref<1x32x16xf32, #tpu.memory_space<vmem>>, vector<1x32x16xf32>,
    return
  }
  func.func @transform_0(%arg0: i32) -> (i32, i32, i32) {
    %c0_i32 = arith.constant 0 : i32
    %c0_i32_0 = arith.constant 0 : i32
    %c0_i32_1 = arith.constant 0 : i32
    return %arg0, %c0_i32, %c0_i32_0 : i32, i32, i32
  }
  func.func @transform_1(%arg0: i32) -> (i32, i32) {
    %c0_i32 = arith.constant 0 : i32
    %c0_i32_0 = arith.constant 0 : i32
    %c0_i32_1 = arith.constant 0 : i32
    return %c0_i32, %c0_i32_0 : i32, i32
  }
  func.func @transform_2(%arg0: i32) -> (i32, i32) {
    %c0_i32 = arith.constant 0 : i32
    %c0_i32_0 = arith.constant 0 : i32
    %c0_i32_1 = arith.constant 0 : i32
    return %c0_i32, %c0_i32_0 : i32, i32
  }
  func.func @transform_3(%arg0: i32) -> (i32, i32) {
    %c0_i32 = arith.constant 0 : i32
    %c0_i32_0 = arith.constant 0 : i32
    %c0_i32_1 = arith.constant 0 : i32
    return %c0_i32, %c0_i32_0 : i32, i32
  }
  func.func @transform_4(%arg0: i32) -> (i32, i32) {
    %c0_i32 = arith.constant 0 : i32
    %c0_i32_0 = arith.constant 0 : i32
    %c0_i32_1 = arith.constant 0 : i32
    return %c0_i32, %c0_i32_0 : i32, i32
  }
  func.func @transform_5(%arg0: i32) -> (i32, i32, i32) {
    %c0_i32 = arith.constant 0 : i32
    %c0_i32_0 = arith.constant 0 : i32
    %c0_i32_1 = arith.constant 0 : i32
    return %arg0, %c0_i32, %c0_i32_0 : i32, i32, i32
  }
}

</mosaic_0001>

<llo_original>
// kernel: tpu_custom_call.1
$region0: #{tpu_custom_call.1}
  #allocation0 [shape = 'u32[]', space=smem, size = 0x4, offset = 0x4, fixed_abs, tag = 'smem constant byte address 0x4 - core index']
  #allocation1 [shape = 'u32[144,128]{1,0:T(1,128)}', space=vmem, size = 0x12000, scoped, tag = 'internal scratch']
  %s0 = inlined_call_operand.vmem [shape: f32[2,16,4], index: 0, kind: input, shape index: {}]
  %s1 = inlined_call_operand.vmem [shape: f32[28,32], index: 1, kind: input, shape index: {}]
  %s2 = inlined_call_operand.vmem [shape: f32[5,32], index: 2, kind: input, shape index: {}]
  %s3 = inlined_call_operand.vmem [shape: f32[32,8], index: 3, kind: input, shape index: {}]
  %s4 = inlined_call_operand.vmem [shape: f32[8,32], index: 4, kind: input, shape index: {}]
  %s5 = inlined_call_operand.vmem [shape: f32[2,32,16], index: 5, kind: output, shape index: {}]
  %s6 = sld [smem:[#allocation0]]
  $region53: #{tpu_custom_call.1} parent=0
    _
  %s8 = ssub.s32 1, %s6
  %s9 = scalar_select 0, %s8, %s6
  loop: start=0, step=1, limit=4
  $region2: #{tpu_custom_call.1} parent=0 // loop_pre_header
    _
  $region3: #{tpu_custom_call.1} parent=0 // loop_header
    %s11 = sphi 0, %s15
    %p12 = scmp.ge.s32.totalorder %s11, 4
    %s21 = sphi 0, %s23
    %s24 = sphi 0, %s21
    %s25 = sphi 0, %s24
    %s41 = sphi 0, %s25
    %s45 = sphi 0, %s45
    %s47 = sphi 0, %s45
    %s48 = sphi 0, %s47
    %s62 = sphi 0, %s48
    %s66 = sphi 0, %s66
    %s68 = sphi 0, %s66
    %s69 = sphi 0, %s68
    %s83 = sphi 0, %s69
    %s87 = sphi 0, %s87
    %s89 = sphi 0, %s87
    %s90 = sphi 0, %s89
    %s104 = sphi 0, %s90
    %s108 = sphi 0, %s108
    %s110 = sphi 0, %s108
    %s111 = sphi 0, %s110
    %s125 = sphi 0, %s111
    %s131 = sphi 0, %s133
    %s134 = sphi 0, %s131
    %s135 = sphi 0, %s134
    %s151 = sphi 0, %s135
  $region4: #{tpu_custom_call.1} parent=0 // loop_header_branch
    %14 = sbr.rel (%p12) target = $region8
  $region5: #{tpu_custom_call.1} parent=0 // loop_body
    %s16 = ssub.s32 %s11, 1
    %s17 = ssub.s32 %s11, 2
    %s18 = sadd.s32 %s11, 1
    %s19 = ssub.s32 %s11, %s18
    %p20 = scmp.eq.s32.totalorder %s19, 0
    %s22 = sadd.s32 %s21, 1
    %s23 = scalar_select %p20, %s21, %s22
    %p26 = pneg %p20
    %p27 = scmp.eq.s32.totalorder %s11, 1
    %p28 = por %p26, %p27
    %p29 = scmp.ne.s32.totalorder %s21, %s24
    %p30 = scmp.eq.s32.totalorder %s11, 0
    %p31 = por %p29, %p30
    %p32 = scmp.ne.s32.totalorder %s21, %s24
    %p33 = scmp.eq.s32.totalorder %s16, 1
    %p34 = por %p32, %p33
    %p35 = scmp.ne.s32.totalorder %s24, %s25
    %p36 = scmp.eq.s32.totalorder %s16, 0
    %p37 = por %p35, %p36
    %p38 = scmp.ne.s32.totalorder %s24, %s25
    %p39 = scmp.eq.s32.totalorder %s17, 1
    %p40 = por %p38, %p39
    %p42 = scmp.ne.s32.totalorder %s25, %s41
    %p43 = scmp.eq.s32.totalorder %s17, 0
    %p44 = por %p42, %p43
    %s46 = sadd.s32 %s45, 1
    %p49 = scmp.eq.s32.totalorder %s11, 1
    %p50 = scmp.ne.s32.totalorder %s45, %s47
    %p51 = scmp.eq.s32.totalorder %s11, 0
    %p52 = por %p50, %p51
    %p53 = scmp.ne.s32.totalorder %s45, %s47
    %p54 = scmp.eq.s32.totalorder %s16, 1
    %p55 = por %p53, %p54
    %p56 = scmp.ne.s32.totalorder %s47, %s48
    %p57 = scmp.eq.s32.totalorder %s16, 0
    %p58 = por %p56, %p57
    %p59 = scmp.ne.s32.totalorder %s47, %s48
    %p60 = scmp.eq.s32.totalorder %s17, 1
    %p61 = por %p59, %p60
    %p63 = scmp.ne.s32.totalorder %s48, %s62
    %p64 = scmp.eq.s32.totalorder %s17, 0
    %p65 = por %p63, %p64
    %s67 = sadd.s32 %s66, 1
    %p70 = scmp.eq.s32.totalorder %s11, 1
    %p71 = scmp.ne.s32.totalorder %s66, %s68
    %p72 = scmp.eq.s32.totalorder %s11, 0
    %p73 = por %p71, %p72
    %p74 = scmp.ne.s32.totalorder %s66, %s68
    %p75 = scmp.eq.s32.totalorder %s16, 1
    %p76 = por %p74, %p75
    %p77 = scmp.ne.s32.totalorder %s68, %s69
    %p78 = scmp.eq.s32.totalorder %s16, 0
    %p79 = por %p77, %p78
    %p80 = scmp.ne.s32.totalorder %s68, %s69
    %p81 = scmp.eq.s32.totalorder %s17, 1
    %p82 = por %p80, %p81
    %p84 = scmp.ne.s32.totalorder %s69, %s83
    %p85 = scmp.eq.s32.totalorder %s17, 0
    %p86 = por %p84, %p85
    %s88 = sadd.s32 %s87, 1
    %p91 = scmp.eq.s32.totalorder %s11, 1
    %p92 = scmp.ne.s32.totalorder %s87, %s89
    %p93 = scmp.eq.s32.totalorder %s11, 0
    %p94 = por %p92, %p93
    %p95 = scmp.ne.s32.totalorder %s87, %s89
    %p96 = scmp.eq.s32.totalorder %s16, 1
    %p97 = por %p95, %p96
    %p98 = scmp.ne.s32.totalorder %s89, %s90
    %p99 = scmp.eq.s32.totalorder %s16, 0
    %p100 = por %p98, %p99
    %p101 = scmp.ne.s32.totalorder %s89, %s90
    %p102 = scmp.eq.s32.totalorder %s17, 1
    %p103 = por %p101, %p102
    %p105 = scmp.ne.s32.totalorder %s90, %s104
    %p106 = scmp.eq.s32.totalorder %s17, 0
    %p107 = por %p105, %p106
    %s109 = sadd.s32 %s108, 1
    %p112 = scmp.eq.s32.totalorder %s11, 1
    %p113 = scmp.ne.s32.totalorder %s108, %s110
    %p114 = scmp.eq.s32.totalorder %s11, 0
    %p115 = por %p113, %p114
    %p116 = scmp.ne.s32.totalorder %s108, %s110
    %p117 = scmp.eq.s32.totalorder %s16, 1
    %p118 = por %p116, %p117
    %p119 = scmp.ne.s32.totalorder %s110, %s111
    %p120 = scmp.eq.s32.totalorder %s16, 0
    %p121 = por %p119, %p120
    %p122 = scmp.ne.s32.totalorder %s110, %s111
    %p123 = scmp.eq.s32.totalorder %s17, 1
    %p124 = por %p122, %p123
    %p126 = scmp.ne.s32.totalorder %s111, %s125
    %p127 = scmp.eq.s32.totalorder %s17, 0
    %p128 = por %p126, %p127
    %s129 = ssub.s32 %s11, %s18
    %p130 = scmp.eq.s32.totalorder %s129, 0
    %s132 = sadd.s32 %s131, 1
    %s133 = scalar_select %p130, %s131, %s132
    %p136 = pneg %p130
    %p137 = scmp.eq.s32.totalorder %s11, 1
    %p138 = por %p136, %p137
    %p139 = scmp.ne.s32.totalorder %s131, %s134
    %p140 = scmp.eq.s32.totalorder %s11, 0
    %p141 = por %p139, %p140
    %p142 = scmp.ne.s32.totalorder %s131, %s134
    %p143 = scmp.eq.s32.totalorder %s16, 1
    %p144 = por %p142, %p143
    %p145 = scmp.ne.s32.totalorder %s134, %s135
    %p146 = scmp.eq.s32.totalorder %s16, 0
    %p147 = por %p145, %p146
    %p148 = scmp.ne.s32.totalorder %s134, %s135
    %p149 = scmp.eq.s32.totalorder %s17, 1
    %p150 = por %p148, %p149
    %p152 = scmp.ne.s32.totalorder %s135, %s151
    %p153 = scmp.eq.s32.totalorder %s17, 0
    %p154 = por %p152, %p153
    %p155 = scmp.le.s32.totalorder 1, %s11
    %p156 = scmp.lt.s32.totalorder %s11, 3
    %p157 = pnand %p155, %p156
    %p158 = pneg %p157
    // Predicated region
    $region9: #{tpu_custom_call.1} parent=5 // pred_check
      _
    $region10: #{tpu_custom_call.1} parent=5 // pred_check_branch
      %160 = sbr.rel (%p157) target = $region12
    $region11: #{tpu_custom_call.1} parent=5 // pred_region
      %s161 = ssub.s32 %s11, 1
      // Predicated region
      $region13: #{tpu_custom_call.1} parent=11 // pred_check
        %p162 = pneg %p58
      $region14: #{tpu_custom_call.1} parent=11 // pred_check_branch
        %164 = sbr.rel (%p162) target = $region16
      $region15: #{tpu_custom_call.1} parent=11 // pred_region
        _
      $region16: #{tpu_custom_call.1} parent=11 // pred_fallthru
        _
      // Predicated region
      $region17: #{tpu_custom_call.1} parent=11 // pred_check
        %p165 = pneg %p79
      $region18: #{tpu_custom_call.1} parent=11 // pred_check_branch
        %167 = sbr.rel (%p165) target = $region20
      $region19: #{tpu_custom_call.1} parent=11 // pred_region
        _
      $region20: #{tpu_custom_call.1} parent=11 // pred_fallthru
        _
      // Predicated region
      $region21: #{tpu_custom_call.1} parent=11 // pred_check
        %p168 = pneg %p100
      $region22: #{tpu_custom_call.1} parent=11 // pred_check_branch
        %170 = sbr.rel (%p168) target = $region24
      $region23: #{tpu_custom_call.1} parent=11 // pred_region
        _
      $region24: #{tpu_custom_call.1} parent=11 // pred_fallthru
        _
      // Predicated region
      $region25: #{tpu_custom_call.1} parent=11 // pred_check
        %p171 = pneg %p121
      $region26: #{tpu_custom_call.1} parent=11 // pred_check_branch
        %173 = sbr.rel (%p171) target = $region28
      $region27: #{tpu_custom_call.1} parent=11 // pred_region
        _
      $region28: #{tpu_custom_call.1} parent=11 // pred_fallthru
        _
    $region12: #{tpu_custom_call.1} parent=5 // pred_fallthru
      _
    %p174 = scmp.lt.s32.totalorder %s11, 2
    // Predicated region
    $region29: #{tpu_custom_call.1} parent=5 // pred_check
      %p175 = pneg %p174
    $region30: #{tpu_custom_call.1} parent=5 // pred_check_branch
      %177 = sbr.rel (%p175) target = $region32
    $region31: #{tpu_custom_call.1} parent=5 // pred_region
      // Predicated region
      $region33: #{tpu_custom_call.1} parent=31 // pred_check
        %p178 = pneg %p31
      $region34: #{tpu_custom_call.1} parent=31 // pred_check_branch
        %180 = sbr.rel (%p178) target = $region36
      $region35: #{tpu_custom_call.1} parent=31 // pred_region
        %p181 = scmp.lt.s32.totalorder %s11, 1
        %s182 = scalar_select %p181, %s11, 1
        %s183 = smul.addr %s182, 2
        %s184 = smul.addr %s183, 8
        %s185 = scalar_lea.vmem %s0, %s184
      $region36: #{tpu_custom_call.1} parent=31 // pred_fallthru
        _
    $region32: #{tpu_custom_call.1} parent=5 // pred_fallthru
      _
    %p186 = scmp.le.s32.totalorder 1, %s11
    %p187 = scmp.lt.s32.totalorder %s11, 3
    %p188 = pnand %p186, %p187
    %p189 = pneg %p188
    // Predicated region
    $region37: #{tpu_custom_call.1} parent=5 // pred_check
      _
    $region38: #{tpu_custom_call.1} parent=5 // pred_check_branch
      %191 = sbr.rel (%p188) target = $region40
    $region39: #{tpu_custom_call.1} parent=5 // pred_region
      %s192 = ssub.s32 %s11, 1
      %p193 = scmp.lt.s32.totalorder %s16, 1
      %s194 = scalar_select %p193, %s16, 1
      %s195 = smul.addr %s194, 2
      %s196 = smul.addr %s195, 8
      %s197 = scalar_lea.vmem %s0, %s196
      %p198 = pneg %p37
      %p199 = pneg %p34
      %p200 = pneg %p58
      %p201 = pneg %p55
      %p202 = pneg %p79
      %p203 = pneg %p76
      %p204 = pneg %p100
      %p205 = pneg %p97
      %p206 = pneg %p121
      %p207 = pneg %p118
      %p208 = pneg %p147
      %p209 = pneg %p144
      %p210 = scmp.lt.s32.totalorder %s16, 1
      %s211 = scalar_select %p210, %s16, 1
      %s212 = smul.addr %s211, 4
      %s213 = smul.addr %s212, 8
      %s214 = scalar_lea.vmem %s5, %s213
      %p215 = scmp.lt.s32.totalorder %s16, 1
      %s216 = scalar_select %p215, %s16, 1
      %s217 = smul.addr %s216, 2
      %s218 = smul.addr %s217, 8
      %s219 = scalar_lea.vmem %s0, %s218
      %p220 = scmp.lt.s32.totalorder %s16, 1
      %s221 = scalar_select %p220, %s16, 1
      %s222 = smul.addr %s221, 4
      %s223 = smul.addr %s222, 8
      %s224 = scalar_lea.vmem %s5, %s223
      %v225 = vld [vmem:[%s219] sm:$0xff]
      %v226 = vld [vmem:[%s219 + $0x8] sm:$0xff]
      %vm229 = vcmask 1042432
      %v230 = vrot.slane %v225, 5
      %v231 = vrot.slane %v226, 5
      %v232 = vsel %vm229, %v230, %v231
      %v236 = vsel %vm229, 0.0, %v230
      %v237 = vsel %vm229, %v231, 0.0
      %vm240 = vcmask 1046528
      %v241 = vrot.slane %v236, 1
      %v242 = vrot.slane %v232, 1
      %v243 = vsel %vm240, %v241, %v242
      %v244 = vrot.slane %v237, 1
      %v245 = vsel %vm240, %v242, %v244
      %246 = vrot.lane.b32.xlu0 %v243, 4
      %v247 = vpop.permute.xlu0 %246
      %248 = vrot.lane.b32.xlu0 %v245, 4
      %v249 = vpop.permute.xlu0 %248
      %vm252 = vcmask 1045504
      %v253 = vrot.slane %v236, 2
      %v254 = vrot.slane %v232, 2
      %v255 = vsel %vm252, %v253, %v254
      %v256 = vrot.slane %v237, 2
      %v257 = vsel %vm252, %v254, %v256
      %258 = vrot.lane.b32.xlu0 %v255, 8
      %v259 = vpop.permute.xlu0 %258
      %260 = vrot.lane.b32.xlu0 %v257, 8
      %v261 = vpop.permute.xlu0 %260
      %vm264 = vcmask 1044480
      %v265 = vrot.slane %v236, 3
      %v266 = vrot.slane %v232, 3
      %v267 = vsel %vm264, %v265, %v266
      %v268 = vrot.slane %v237, 3
      %v269 = vsel %vm264, %v266, %v268
      %270 = vrot.lane.b32.xlu0 %v267, 12
      %v271 = vpop.permute.xlu0 %270
      %272 = vrot.lane.b32.xlu0 %v269, 12
      %v273 = vpop.permute.xlu0 %272
      %vm276 = vcmask 1043456
      %v277 = vrot.slane %v236, 4
      %v278 = vrot.slane %v232, 4
      %v279 = vsel %vm276, %v277, %v278
      %v280 = vrot.slane %v237, 4
      %v281 = vsel %vm276, %v278, %v280
      %282 = vrot.lane.b32.xlu0 %v279, 16
      %v283 = vpop.permute.xlu0 %282
      %284 = vrot.lane.b32.xlu0 %v281, 16
      %v285 = vpop.permute.xlu0 %284
      %v288 = vrot.slane %v236, 5
      %v289 = vrot.slane %v232, 5
      %v290 = vsel %vm229, %v288, %v289
      %v291 = vrot.slane %v237, 5
      %v292 = vsel %vm229, %v289, %v291
      %293 = vrot.lane.b32.xlu0 %v290, 20
      %v294 = vpop.permute.xlu0 %293
      %295 = vrot.lane.b32.xlu0 %v292, 20
      %v296 = vpop.permute.xlu0 %295
      %vm299 = vcmask 1041408
      %v300 = vrot.slane %v236, 6
      %v301 = vrot.slane %v232, 6
      %v302 = vsel %vm299, %v300, %v301
      %v303 = vrot.slane %v237, 6
      %v304 = vsel %vm299, %v301, %v303
      %305 = vrot.lane.b32.xlu0 %v302, 24
      %v306 = vpop.permute.xlu0 %305
      %307 = vrot.lane.b32.xlu0 %v304, 24
      %v308 = vpop.permute.xlu0 %307
      %vm311 = vcmask 31744
      %v312 = vsel %vm311, %v236, %v247
      %v313 = vsel %vm311, %v232, %v249
      %vm314 = vcmask 64512
      %v315 = vsel %vm314, %v312, %v259
      %v316 = vsel %vm314, %v313, %v261
      %vm317 = vcmask 97280
      %v318 = vsel %vm317, %v315, %v271
      %v319 = vsel %vm317, %v316, %v273
      %vm320 = vcmask 130048
      %v321 = vsel %vm320, %v318, %v283
      %v322 = vsel %vm320, %v319, %v285
      %vm323 = vcmask 162816
      %v324 = vsel %vm323, %v321, %v294
      %v325 = vsel %vm323, %v322, %v296
      %vm326 = vcmask 195584
      %v327 = vsel %vm326, %v324, %v306
      %v328 = vsel %vm326, %v325, %v308
      %v329 = vld [vmem:[%s2] sm:$0x1f]
      %v330 = vld [vmem:[%s1] sm:$0xff]
      %v331 = vld [vmem:[%s1 + $0x8] sm:$0xff]
      %v332 = vld [vmem:[%s1 + $0x10] sm:$0xff]
      %v333 = vld [vmem:[%s1 + $0x18] sm:$0xf]
      %v334 = vlaneseq
      %v335 = vshrl.u32 %v334, 7
      %v336 = vsub.s32 0, %v335
      %v337 = vrot.slane %v329, %v336
      %vm338 = vcmask 228352
      %v340 = vsel %vm338, %v327, 0
      %v343 = vsel %vm338, %v328, 0
      %v346 = vsel %vm276, %v333, 0
      %348 = vmatprep.subr.mxu0 0.0
      %349 = vmatpush1.msra.mxu0 %v330
      %350 = vmatprep.subr.mxu0 0.0
      %351 = vmatpush1.msra.mxu0 %v331
      %352 = vmatprep.subr.mxu0 0.0
      %353 = vmatpush1.msra.mxu0 %v332
      %354 = vmatprep.subr.mxu0 0.0
      %355 = vmatpush1.msra.mxu0 %v346
      %356 = vmatprep.subr.mxu0 0.0
      %357 = vmatpush1.msra.mxu0 0.0
      %358 = vmatprep.subr.mxu0 0.0
      %359 = vmatpush1.msra.mxu0 0.0
      %360 = vmatprep.subr.mxu0 0.0
      %361 = vmatpush1.msra.mxu0 0.0
      %362 = vmatprep.subr.mxu0 0.0
      %363 = vmatpush1.msra.mxu0 0.0
      %364 = vmatprep.subr.mxu0 0.0
      %365 = vmatpush1.msra.mxu0 0.0
      %366 = vmatprep.subr.mxu0 0.0
      %367 = vmatpush1.msra.mxu0 0.0
      %368 = vmatprep.subr.mxu0 0.0
      %369 = vmatpush1.msra.mxu0 0.0
      %370 = vmatprep.subr.mxu0 0.0
      %371 = vmatpush1.msra.mxu0 0.0
      %372 = vmatprep.subr.mxu0 0.0
      %373 = vmatpush1.msra.mxu0 0.0
      %374 = vmatprep.subr.mxu0 0.0
      %375 = vmatpush1.msra.mxu0 0.0
      %376 = vmatprep.subr.mxu0 0.0
      %377 = vmatpush1.msra.mxu0 0.0
      %378 = vmatprep.subr.mxu0 0.0
      %379 = vmatpush1.msra.mxu0 0.0
      %380 = vmatprep.subr.mxu0 0.0
      %381 = vmatpush1.msra.mxu0 0.0
      %382 = vmatprep.subr.mxu0 0.0
      %383 = vmatpush1.msra.mxu0 0.0
      %384 = vmatprep.subr.mxu0 0.0
      %385 = vmatpush1.msra.mxu0 0.0
      %386 = vmatprep.subr.mxu0 0.0
      %387 = vmatpush1.msra.mxu0 0.0
      %388 = vmatprep.subr.mxu0 0.0
      %389 = vmatpush1.msra.mxu0 0.0
      %390 = vmatprep.subr.mxu0 0.0
      %391 = vmatpush1.msra.mxu0 0.0
      %392 = vmatprep.subr.mxu0 0.0
      %393 = vmatpush1.msra.mxu0 0.0
      %394 = vmatprep.subr.mxu0 0.0
      %395 = vmatpush1.msra.mxu0 0.0
      %396 = vmatprep.subr.mxu0 0.0
      %397 = vmatpush1.msra.mxu0 0.0
      %398 = vmatprep.subr.mxu0 0.0
      %399 = vmatpush1.msra.mxu0 0.0
      %400 = vmatprep.subr.mxu0 0.0
      %401 = vmatpush1.msra.mxu0 0.0
      %402 = vmatprep.subr.mxu0 0.0
      %403 = vmatpush1.msra.mxu0 0.0
      %404 = vmatprep.subr.mxu0 0.0
      %405 = vmatpush1.msra.mxu0 0.0
      %406 = vmatprep.subr.mxu0 0.0
      %407 = vmatpush1.msra.mxu0 0.0
      %408 = vmatprep.subr.mxu0 0.0
      %409 = vmatpush1.msra.mxu0 0.0
      %410 = vmatprep.subr.mxu0 0.0
      %411 = vmatpush1.msra.mxu0 0.0
      %412 = vmatprep.mubr.f32.mxu0 0.0
      %413 = vmatmul.mubr.f32.gmra.mrb[0].mxu0 %v340
      %v414 = vpop.f32.mrb[0].mxu0
      %v415 = vadd.f32 %v337, %v414
      %v416 = vpop.f32.mrb[0].mxu0
      %417 = vmatprep.mubr.f32.mxu0 0.0
      %418 = vmatmul.mubr.f32.gmra.mrb[0].mxu0 %v343
      %v419 = vpop.f32.mrb[0].mxu0
      %v420 = vadd.f32 %v337, %v419
      %v421 = vpop.f32.mrb[0].mxu0
      %422 = vdwg.mxu0
      %v423 = vlaneseq
      %v424 = vshrl.u32 %v423, 7
      %v425 = vsub.s32 1, %v424
      %v426 = vrot.slane %v329, %v425
      %v427 = vmul.f32 %v415, %v426
      %v428 = vmul.f32 %v420, %v426
      %v429 = vlaneseq
      %v430 = vshrl.u32 %v429, 7
      %v431 = vsub.s32 2, %v430
      %v432 = vrot.slane %v329, %v431
      %v433 = vadd.f32 %v427, %v432
      %v434 = vadd.f32 %v428, %v432
      %vm435 = vcmp.gt.f32.partialorder %v433, 0.0
      %vm436 = vcmp.gt.f32.partialorder %v434, 0.0
      %v437 = vmul.f32 %v433, 0.25
      %v438 = vmul.f32 %v434, 0.25
      %v439 = vsel %vm435, %v433, %v437
      %v440 = vsel %vm436, %v434, %v438
      %vm441 = vcmask 261120
      %v442 = vsel %vm441, %v439, 0.0
      %v443 = vsel %vm441, %v440, 0.0
      %v444 = vadd.f32 %v442, %v443
      %v445 = vrot.slane %v444, 4
      %v446 = vadd.f32 %v444, %v445
      %v447 = vrot.slane %v446, 2
      %v448 = vadd.f32 %v446, %v447
      %v449 = vrot.slane %v448, 1
      %v450 = vadd.f32 %v448, %v449
      %v451 = vrcp.pop 16.0
      %v452 = vmul.f32 %v450, %v451
      %v453 = vld [vmem:[%s3] sm:$0xff]
      %v454 = vld [vmem:[%s3 + $0x8] sm:$0xff]
      %v455 = vld [vmem:[%s3 + $0x10] sm:$0xff]
      %v456 = vld [vmem:[%s3 + $0x18] sm:$0xff]
      %v458 = vrot.slane %v329, 4
      %v461 = vsel %vm441, %v452, 0
      %463 = vmatprep.subr.mxu0 0.0
      %464 = vmatpush1.msra.mxu0 %v453
      %465 = vmatprep.subr.mxu0 0.0
      %466 = vmatpush1.msra.mxu0 %v454
      %467 = vmatprep.subr.mxu0 0.0
      %468 = vmatpush1.msra.mxu0 %v455
      %469 = vmatprep.subr.mxu0 0.0
      %470 = vmatpush1.msra.mxu0 %v456
      %471 = vmatprep.subr.mxu0 0.0
      %472 = vmatpush1.msra.mxu0 0.0
      %473 = vmatprep.subr.mxu0 0.0
      %474 = vmatpush1.msra.mxu0 0.0
      %475 = vmatprep.subr.mxu0 0.0
      %476 = vmatpush1.msra.mxu0 0.0
      %477 = vmatprep.subr.mxu0 0.0
      %478 = vmatpush1.msra.mxu0 0.0
      %479 = vmatprep.subr.mxu0 0.0
      %480 = vmatpush1.msra.mxu0 0.0
      %481 = vmatprep.subr.mxu0 0.0
      %482 = vmatpush1.msra.mxu0 0.0
      %483 = vmatprep.subr.mxu0 0.0
      %484 = vmatpush1.msra.mxu0 0.0
      %485 = vmatprep.subr.mxu0 0.0
      %486 = vmatpush1.msra.mxu0 0.0
      %487 = vmatprep.subr.mxu0 0.0
      %488 = vmatpush1.msra.mxu0 0.0
      %489 = vmatprep.subr.mxu0 0.0
      %490 = vmatpush1.msra.mxu0 0.0
      %491 = vmatprep.subr.mxu0 0.0
      %492 = vmatpush1.msra.mxu0 0.0
      %493 = vmatprep.subr.mxu0 0.0
      %494 = vmatpush1.msra.mxu0 0.0
      %495 = vmatprep.subr.mxu0 0.0
      %496 = vmatpush1.msra.mxu0 0.0
      %497 = vmatprep.subr.mxu0 0.0
      %498 = vmatpush1.msra.mxu0 0.0
      %499 = vmatprep.subr.mxu0 0.0
      %500 = vmatpush1.msra.mxu0 0.0
      %501 = vmatprep.subr.mxu0 0.0
      %502 = vmatpush1.msra.mxu0 0.0
      %503 = vmatprep.subr.mxu0 0.0
      %504 = vmatpush1.msra.mxu0 0.0
      %505 = vmatprep.subr.mxu0 0.0
      %506 = vmatpush1.msra.mxu0 0.0
      %507 = vmatprep.subr.mxu0 0.0
      %508 = vmatpush1.msra.mxu0 0.0
      %509 = vmatprep.subr.mxu0 0.0
      %510 = vmatpush1.msra.mxu0 0.0
      %511 = vmatprep.subr.mxu0 0.0
      %512 = vmatpush1.msra.mxu0 0.0
      %513 = vmatprep.subr.mxu0 0.0
      %514 = vmatpush1.msra.mxu0 0.0
      %515 = vmatprep.subr.mxu0 0.0
      %516 = vmatpush1.msra.mxu0 0.0
      %517 = vmatprep.subr.mxu0 0.0
      %518 = vmatpush1.msra.mxu0 0.0
      %519 = vmatprep.subr.mxu0 0.0
      %520 = vmatpush1.msra.mxu0 0.0
      %521 = vmatprep.subr.mxu0 0.0
      %522 = vmatpush1.msra.mxu0 0.0
      %523 = vmatprep.subr.mxu0 0.0
      %524 = vmatpush1.msra.mxu0 0.0
      %525 = vmatprep.subr.mxu0 0.0
      %526 = vmatpush1.msra.mxu0 0.0
      %527 = vmatprep.mubr.f32.mxu0 0.0
      %528 = vmatmul.mubr.f32.gmra.mrb[0].mxu0 %v461
      %v529 = vpop.f32.mrb[0].mxu0
      %v530 = vadd.f32 %v458, %v529
      %v531 = vpop.f32.mrb[0].mxu0
      %532 = vdwg.mxu0
      %vm533 = vcmp.gt.f32.partialorder %v530, 0.0
      %v534 = vmul.f32 %v530, 0.25
      %v535 = vsel %vm533, %v530, %v534
      %v536 = vld [vmem:[%s4] sm:$0xff]
      %v537 = vrot.slane %v329, 3
      %v540 = vsel %vm314, %v535, 0
      %542 = vmatprep.subr.mxu0 0.0
      %543 = vmatpush1.msra.mxu0 %v536
      %544 = vmatprep.subr.mxu0 0.0
      %545 = vmatpush1.msra.mxu0 0.0
      %546 = vmatprep.subr.mxu0 0.0
      %547 = vmatpush1.msra.mxu0 0.0
      %548 = vmatprep.subr.mxu0 0.0
      %549 = vmatpush1.msra.mxu0 0.0
      %550 = vmatprep.subr.mxu0 0.0
      %551 = vmatpush1.msra.mxu0 0.0
      %552 = vmatprep.subr.mxu0 0.0
      %553 = vmatpush1.msra.mxu0 0.0
      %554 = vmatprep.subr.mxu0 0.0
      %555 = vmatpush1.msra.mxu0 0.0
      %556 = vmatprep.subr.mxu0 0.0
      %557 = vmatpush1.msra.mxu0 0.0
      %558 = vmatprep.subr.mxu0 0.0
      %559 = vmatpush1.msra.mxu0 0.0
      %560 = vmatprep.subr.mxu0 0.0
      %561 = vmatpush1.msra.mxu0 0.0
      %562 = vmatprep.subr.mxu0 0.0
      %563 = vmatpush1.msra.mxu0 0.0
      %564 = vmatprep.subr.mxu0 0.0
      %565 = vmatpush1.msra.mxu0 0.0
      %566 = vmatprep.subr.mxu0 0.0
      %567 = vmatpush1.msra.mxu0 0.0
      %568 = vmatprep.subr.mxu0 0.0
      %569 = vmatpush1.msra.mxu0 0.0
      %570 = vmatprep.subr.mxu0 0.0
      %571 = vmatpush1.msra.mxu0 0.0
      %572 = vmatprep.subr.mxu0 0.0
      %573 = vmatpush1.msra.mxu0 0.0
      %574 = vmatprep.subr.mxu0 0.0
      %575 = vmatpush1.msra.mxu0 0.0
      %576 = vmatprep.subr.mxu0 0.0
      %577 = vmatpush1.msra.mxu0 0.0
      %578 = vmatprep.subr.mxu0 0.0
      %579 = vmatpush1.msra.mxu0 0.0
      %580 = vmatprep.subr.mxu0 0.0
      %581 = vmatpush1.msra.mxu0 0.0
      %582 = vmatprep.subr.mxu0 0.0
      %583 = vmatpush1.msra.mxu0 0.0
      %584 = vmatprep.subr.mxu0 0.0
      %585 = vmatpush1.msra.mxu0 0.0
      %586 = vmatprep.subr.mxu0 0.0
      %587 = vmatpush1.msra.mxu0 0.0
      %588 = vmatprep.subr.mxu0 0.0
      %589 = vmatpush1.msra.mxu0 0.0
      %590 = vmatprep.subr.mxu0 0.0
      %591 = vmatpush1.msra.mxu0 0.0
      %592 = vmatprep.subr.mxu0 0.0
      %593 = vmatpush1.msra.mxu0 0.0
      %594 = vmatprep.subr.mxu0 0.0
      %595 = vmatpush1.msra.mxu0 0.0
      %596 = vmatprep.subr.mxu0 0.0
      %597 = vmatpush1.msra.mxu0 0.0
      %598 = vmatprep.subr.mxu0 0.0
      %599 = vmatpush1.msra.mxu0 0.0
      %600 = vmatprep.subr.mxu0 0.0
      %601 = vmatpush1.msra.mxu0 0.0
      %602 = vmatprep.subr.mxu0 0.0
      %603 = vmatpush1.msra.mxu0 0.0
      %604 = vmatprep.subr.mxu0 0.0
      %605 = vmatpush1.msra.mxu0 0.0
      %606 = vmatprep.mubr.f32.mxu0 0.0
      %607 = vmatmul.mubr.f32.gmra.mrb[0].mxu0 %v540
      %v608 = vpop.f32.mrb[0].mxu0
      %v609 = vadd.f32 %v537, %v608
      %v610 = vpop.f32.mrb[0].mxu0
      %611 = vdwg.mxu0
      %v612 = vxor.u32 %v609, 2147483648
      %v613 = vmul.f32 %v612, 1.442695
      %v614 = vpow.pop %v613
      %v615 = vadd.f32 %v614, 1.0
      %v616 = vrcp.pop %v615
      %v617 = vmul.f32 1.0, %v616
      %v618 = vlaneseq
      %v619 = vshrl.u32 %v618, 7
      %v620 = vsub.s32 0, %v619
      %v621 = vrot.slane %v617, %v620
      %v622 = vmul.f32 %v439, %v621
      %v623 = vmul.f32 %v440, %v621
      %624 = vxpose.xlu0.b32.start [1/16] %v622, 128
      %625 = vxpose.xlu0.b32.cont [2/16] %v623, 128
      %626 = vxpose.xlu0.b32.cont [3/16] 0.0, 128
      %627 = vxpose.xlu0.b32.cont [4/16] 0.0, 128
      %628 = vxpose.xlu0.b32.cont [5/16] 0.0, 128
      %629 = vxpose.xlu0.b32.cont [6/16] 0.0, 128
      %630 = vxpose.xlu0.b32.cont [7/16] 0.0, 128
      %631 = vxpose.xlu0.b32.cont [8/16] 0.0, 128
      %632 = vxpose.xlu0.b32.cont [9/16] 0.0, 128
      %633 = vxpose.xlu0.b32.cont [10/16] 0.0, 128
      %634 = vxpose.xlu0.b32.cont [11/16] 0.0, 128
      %635 = vxpose.xlu0.b32.cont [12/16] 0.0, 128
      %636 = vxpose.xlu0.b32.cont [13/16] 0.0, 128
      %637 = vxpose.xlu0.b32.cont [14/16] 0.0, 128
      %638 = vxpose.xlu0.b32.cont [15/16] 0.0, 128
      %639 = vxpose.xlu0.b32.end [16/16] 0.0, 128
      %v640 = vpop.trf.xlu0
      %v641 = vpop.trf.xlu0
      %v642 = vpop.trf.xlu0
      %v643 = vpop.trf.xlu0
      %v644 = vpop.trf.xlu0
      %v645 = vpop.trf.xlu0
      %v646 = vpop.trf.xlu0
      %v647 = vpop.trf.xlu0
      %v648 = vpop.trf.xlu0
      %v649 = vpop.trf.xlu0
      %v650 = vpop.trf.xlu0
      %v651 = vpop.trf.xlu0
      %v652 = vpop.trf.xlu0
      %v653 = vpop.trf.xlu0
      %v654 = vpop.trf.xlu0
      %v655 = vpop.trf.xlu0
      %656 = vst.msk [vmem:[%s224] sm:$0xff] %vm320, %v640
      %657 = vst.msk [vmem:[%s224 + $0x8] sm:$0xff] %vm320, %v641
      %658 = vst.msk [vmem:[%s224 + $0x10] sm:$0xff] %vm320, %v642
      %659 = vst.msk [vmem:[%s224 + $0x18] sm:$0xff] %vm320, %v643
      %p660 = scmp.lt.s32.totalorder %s16, 1
      %s661 = scalar_select %p660, %s16, 1
      %s662 = smul.addr %s661, 4
      %s663 = smul.addr %s662, 8
      %s664 = scalar_lea.vmem %s5, %s663
      // Predicated region
      $region41: #{tpu_custom_call.1} parent=39 // pred_check
        %p665 = pneg %p144
      $region42: #{tpu_custom_call.1} parent=39 // pred_check_branch
        %667 = sbr.rel (%p665) target = $region44
      $region43: #{tpu_custom_call.1} parent=39 // pred_region
        _
      $region44: #{tpu_custom_call.1} parent=39 // pred_fallthru
        _
    $region40: #{tpu_custom_call.1} parent=5 // pred_fallthru
      _
    %p668 = scmp.le.s32.totalorder 2, %s11
    // Predicated region
    $region45: #{tpu_custom_call.1} parent=5 // pred_check
      %p669 = pneg %p668
    $region46: #{tpu_custom_call.1} parent=5 // pred_check_branch
      %671 = sbr.rel (%p669) target = $region48
    $region47: #{tpu_custom_call.1} parent=5 // pred_region
      %s672 = ssub.s32 %s11, 2
      // Predicated region
      $region49: #{tpu_custom_call.1} parent=47 // pred_check
        %p673 = pneg %p150
      $region50: #{tpu_custom_call.1} parent=47 // pred_check_branch
        %675 = sbr.rel (%p673) target = $region52
      $region51: #{tpu_custom_call.1} parent=47 // pred_region
        %p676 = scmp.lt.s32.totalorder %s17, 1
        %s677 = scalar_select %p676, %s17, 1
        %s678 = smul.addr %s677, 4
        %s679 = smul.addr %s678, 8
        %s680 = scalar_lea.vmem %s5, %s679
      $region52: #{tpu_custom_call.1} parent=47 // pred_fallthru
        _
    $region48: #{tpu_custom_call.1} parent=5 // pred_fallthru
      _
  $region6: #{tpu_custom_call.1} parent=0 // loop_footer
    %s15 = sadd.s32 1, %s11
  $region7: #{tpu_custom_call.1} parent=0 // loop_footer_branch
    %10 = sbr.rel target = $region3
  $region8: #{tpu_custom_call.1} parent=0 // loop_exit
    _

</llo_original>
